<compile_context>
chip_gen: v7x
topology: tpu7x:2x2x1
jax: 0.10.0
libtpu: 0.0.40
codegen_flags: <defaults>
</compile_context>

<pallas_src>
import jax
import jax.numpy as jnp
from jax import lax
from jax.experimental import pallas as pl
from jax.experimental.pallas import tpu as pltpu

IN_FEATURES = 25088    # fixed by the module: nn.Linear(25088, 1)
OUT_FEATURES = 1
CONSTANT = 64.0

LANE = 128
CHUNK = 3584                       # 25088 = 7 * 3584 ; 28 lane-tiles per chunk
N_CHUNKS = IN_FEATURES // CHUNK    # 7
assert N_CHUNKS * CHUNK == IN_FEATURES


# ----------------------------------------------------------------------------
# Fast path: the epilogue multiplies the linear output by zero, so the result
# is a constant.  No Pallas kernel — plain jnp is strictly cheaper and fusable.
# ----------------------------------------------------------------------------
def dummy_head_forward(x, weight=None, bias=None):
    """Constant-folded forward.  x: (B, 25088); weight/bias accepted for API
    parity but unused (their contribution is multiplied by zero).

    Diverges from PyTorch only when x / weight / bias contain NaN or Inf
    (PyTorch would propagate NaN); use dummy_head_forward_strict for that.
    """
    B = x.shape[0]
    return {"scale": jnp.full((B, OUT_FEATURES), CONSTANT, dtype=x.dtype)}


# ----------------------------------------------------------------------------
# Strict path: keeps the (dead) linear so NaN/Inf in x / weight / bias still
# propagates exactly like `0 * lin(x) + 64.0` does in PyTorch.
# ----------------------------------------------------------------------------
def _dummy_head_strict_kernel(x_ref, w_ref, b_ref, o_ref):
    tm = x_ref.shape[0]

    # Chunked VPU dot product: never materialize the (tm, 25088) product.
    # Carry a (tm, CHUNK) accumulator through a fori_loop (bounds live ranges
    # to ~2 * tm * CHUNK * 4 B of temps), then one cross-lane reduce at the end.
    def body(c, acc):
        off = pl.multiple_of(c * CHUNK, LANE)
        xc = x_ref[:, pl.ds(off, CHUNK)]
        wc = w_ref[:, pl.ds(off, CHUNK)]          # (1, CHUNK) broadcast over rows
        return acc + xc * wc

    acc = lax.fori_loop(0, N_CHUNKS, body,
                        jnp.zeros((tm, CHUNK), jnp.float32))
    lin = jnp.sum(acc, axis=-1, keepdims=True) + b_ref[...]

    # Kept literal (not folded) so non-finite values propagate: 0 * NaN = NaN.
    o_ref[...] = (0.0 * lin + jnp.full_like(lin, CONSTANT)).astype(o_ref.dtype)


def _select_tm(B, tm):
    if tm is not None:
        if tm == B:
            return tm
        tm = max(8, ((tm + 7) // 8) * 8)          # keep (8, 128) block rule
        return min(tm, 128)
    if B <= 8:
        return B                                  # single tiny step
    # Aim for >= 2 grid steps so both v7x TensorCores stream rows in parallel;
    # round half-batch up to a sublane multiple; cap at 128 (VMEM / v7x).
    tm = -(-B // 2)                               # ceil(B / 2)
    tm = ((tm + 7) // 8) * 8
    return min(tm, 128)


def dummy_head_forward_strict(x, weight, bias, *, tm=None):
    """x: (B, 25088) f32, weight: (25088, 1) f32, bias: (1,) or (1, 1) f32.

    Note: the in-kernel summation order (chunked lane-tree reduce) differs from
    PyTorch's GEMV; since the result is multiplied by 0 only finiteness of the
    intermediate matters.
    """
    B, K = x.shape
    assert K == IN_FEATURES

    w_row = weight.reshape(1, K)                  # lane-dense weight row
    b = bias.reshape(1, OUT_FEATURES)

    tm = _select_tm(B, tm)
    grid = (pl.cdiv(B, tm),)                      # padded last block if needed

    out = pl.pallas_call(
        _dummy_head_strict_kernel,
        out_shape=jax.ShapeDtypeStruct((B, OUT_FEATURES), jnp.float32),
        grid_spec=pltpu.PrefetchScalarGridSpec(
            num_scalar_prefetch=0,
            grid=grid,
            in_specs=[
                pl.BlockSpec((tm, K), lambda i: (i, 0)),             # x rows
                pl.BlockSpec((1, K), lambda i: (0, 0)),              # weight row
                pl.BlockSpec((1, OUT_FEATURES), lambda i: (0, 0)),   # bias
            ],
            out_specs=pl.BlockSpec((tm, OUT_FEATURES), lambda i: (i, 0)),
        ),
        compiler_params=pltpu.CompilerParams(
            dimension_semantics=("parallel",),
            # tm=128 double-buffered x blocks (~25 MiB) exceed the 32 MiB
            # scoped default; raise only when needed (safe within v7x 64 MiB
            # because the chunked reduce bounds in-kernel temps to a few MiB).
            vmem_limit_bytes=(48 * 1024 * 1024) if tm > 64 else None,
        ),
        cost_estimate=pl.CostEstimate(
            flops=2 * B * K,
            transcendentals=0,
            bytes_accessed=B * K * 4 + K * 4 + B * 4,
        ),
    )(x, w_row, b)
    return {"scale": out}


# TODO(synk): torch.cuda.amp.autocast(fp16) has no TPU equivalent here; the
# strict kernel streams/accumulates in f32 (bf16 x-stream is a possible 2x
# HBM-BW win but changes NaN/Inf fidelity, so it is not done by default).


if __name__ == "__main__":
    key = jax.random.PRNGKey(0)
    k_x, k_w, k_b = jax.random.split(key, 3)

    B = 2  # small batch; feature dim is fixed at 25088 by the module
    x = jax.random.normal(k_x, (B, IN_FEATURES), dtype=jnp.float32)

    # Deterministic synthetic parameters (nn.Linear(25088, 1) shapes).
    bound = 1.0 / (IN_FEATURES ** 0.5)
    weight = jax.random.uniform(
        k_w, (IN_FEATURES, OUT_FEATURES), minval=-bound, maxval=bound,
        dtype=jnp.float32)
    bias = jax.random.uniform(
        k_b, (OUT_FEATURES,), minval=-bound, maxval=bound, dtype=jnp.float32)

    expected = jnp.full((B, OUT_FEATURES), CONSTANT, dtype=jnp.float32)

    # Fast (constant-folded) path — the recommended default.
    out_fast = dummy_head_forward(x, weight, bias)
    scale_fast = jax.block_until_ready(out_fast["scale"])
    assert scale_fast.shape == (B, OUT_FEATURES)
    assert jnp.allclose(scale_fast, expected), scale_fast

    # Strict path — B=2, single grid step (block == full array).
    out_strict = dummy_head_forward_strict(x, weight, bias)
    scale_strict = jax.block_until_ready(out_strict["scale"])
    assert scale_strict.shape == (B, OUT_FEATURES)
    assert jnp.allclose(scale_strict, expected), scale_strict

    # Strict path — batch not divisible by the tile: exercises the cdiv grid,
    # padded last block, and the >= 2 parallel grid steps (v7x megacore) path.
    B2 = 10
    x2 = jax.random.normal(k_x, (B2, IN_FEATURES), dtype=jnp.float32)
    out2 = dummy_head_forward_strict(x2, weight, bias)
    scale2 = jax.block_until_ready(out2["scale"])
    assert scale2.shape == (B2, OUT_FEATURES)
    assert jnp.allclose(
        scale2, jnp.full((B2, OUT_FEATURES), CONSTANT, jnp.float32)), scale2

    # NaN-propagation fidelity of the strict path (PyTorch: 0 * NaN + 64 = NaN).
    x_nan = x.at[0, 0].set(jnp.nan)
    out_nan = jax.block_until_ready(
        dummy_head_forward_strict(x_nan, weight, bias)["scale"])
    assert jnp.isnan(out_nan[0, 0]), out_nan
    assert jnp.allclose(out_nan[1], CONSTANT), out_nan

    print("KERNEL_OK")
</pallas_src>

<mosaic_0001>
module attributes {stable_mosaic.version = 11 : i64} {
  func.func @_dummy_head_strict_kernel(%arg0: i32, %arg1: memref<2x25088xf32, #tpu.memory_space<vmem>>, %arg2: memref<1x25088xf32, #tpu.memory_space<vmem>>, %arg3: memref<1x1xf32, #tpu.memory_space<vmem>>, %arg4: memref<2x1xf32, #tpu.memory_space<vmem>>) attributes {dimension_semantics = [#tpu.dimension_semantics<parallel>], iteration_bounds = array<i64: 1>, scalar_prefetch = 0 : i64, scratch_operands = 0 : i64, tpu.core_type = #tpu.core_type<tc>, window_params = [{transform_indices = @transform_0, window_bounds = array<i64: 2, 25088>}, {pipeline_mode = #tpu.pipeline_mode<synchronous>, transform_indices = @transform_1, window_bounds = array<i64: 1, 25088>}, {pipeline_mode = #tpu.pipeline_mode<synchronous>, transform_indices = @transform_2, window_bounds = array<i64: 1, 1>}, {transform_indices = @transform_3, window_bounds = array<i64: 2, 1>}]} {
    %cst = arith.constant 0.000000e+00 : f32
    %0 = vector.broadcast %cst : f32 to vector<2x3584xf32>
    %c0_i32 = arith.constant 0 : i32
    %c7_i32 = arith.constant 7 : i32
    %1 = arith.addi %c0_i32, %c7_i32 : i32
    %c1_i32 = arith.constant 1 : i32
    %2 = scf.for %arg5 = %c0_i32 to %1 step %c1_i32 iter_args(%arg6 = %0) -> (vector<2x3584xf32>)  : i32 {
      %c3584_i32 = arith.constant 3584 : i32
      %13 = arith.muli %arg5, %c3584_i32 : i32
      %14 = tpu.assume_multiple %13, 128 : i32
      %c0_7 = arith.constant 0 : index
      %15 = arith.index_cast %14 : i32 to index
      %16 = vector.load %arg1[%c0_7, %15] : memref<2x25088xf32, #tpu.memory_space<vmem>>, vector<2x3584xf32>
      %c0_8 = arith.constant 0 : index
      %17 = arith.index_cast %14 : i32 to index
      %18 = vector.load %arg2[%c0_8, %17] : memref<1x25088xf32, #tpu.memory_space<vmem>>, vector<1x3584xf32>
      %19 = vector.broadcast %18 : vector<1x3584xf32> to vector<2x3584xf32>
      %20 = arith.mulf %16, %19 : vector<2x3584xf32>
      %21 = arith.addf %arg6, %20 : vector<2x3584xf32>
      scf.yield %21 : vector<2x3584xf32>
    }
    %c7_i32_0 = arith.constant 7 : i32
    %cst_1 = arith.constant dense<0.000000e+00> : vector<2xf32>
    %3 = vector.multi_reduction <add>, %2, %cst_1 [1] : vector<2x3584xf32> to vector<2xf32>
    %4 = vector.shape_cast %3 : vector<2xf32> to vector<2x1xf32>
    %c0 = arith.constant 0 : index
    %c0_2 = arith.constant 0 : index
    %5 = vector.load %arg3[%c0, %c0_2] : memref<1x1xf32, #tpu.memory_space<vmem>>, vector<1x1xf32>
    %6 = vector.broadcast %5 : vector<1x1xf32> to vector<2x1xf32>
    %7 = arith.addf %4, %6 : vector<2x1xf32>
    %cst_3 = arith.constant 0.000000e+00 : f32
    %8 = vector.broadcast %cst_3 : f32 to vector<2x1xf32>
    %9 = arith.mulf %8, %7 : vector<2x1xf32>
    %cst_4 = arith.constant 6.400000e+01 : f32
    %10 = vector.broadcast %cst_4 : f32 to vector<2x1xf32>
    %11 = arith.addf %9, %10 : vector<2x1xf32>
    %c0_5 = arith.constant 0 : index
    %c0_6 = arith.constant 0 : index
    %12 = vector.load %arg4[%c0_5, %c0_6] : memref<2x1xf32, #tpu.memory_space<vmem>>, vector<2x1xf32>
    tpu.vector_store %arg4[%c0_5, %c0_6], %11 {strides = array<i32>} : memref<2x1xf32, #tpu.memory_space<vmem>>, vector<2x1xf32>,
    return
  }
  func.func @transform_0(%arg0: i32) -> (i32, i32) {
    %c0_i32 = arith.constant 0 : i32
    %c0_i32_0 = arith.constant 0 : i32
    return %arg0, %c0_i32 : i32, i32
  }
  func.func @transform_1(%arg0: i32) -> (i32, i32) {
    %c0_i32 = arith.constant 0 : i32
    %c0_i32_0 = arith.constant 0 : i32
    %c0_i32_1 = arith.constant 0 : i32
    return %c0_i32, %c0_i32_0 : i32, i32
  }
  func.func @transform_2(%arg0: i32) -> (i32, i32) {
    %c0_i32 = arith.constant 0 : i32
    %c0_i32_0 = arith.constant 0 : i32
    %c0_i32_1 = arith.constant 0 : i32
    return %c0_i32, %c0_i32_0 : i32, i32
  }
  func.func @transform_3(%arg0: i32) -> (i32, i32) {
    %c0_i32 = arith.constant 0 : i32
    %c0_i32_0 = arith.constant 0 : i32
    return %arg0, %c0_i32 : i32, i32
  }
}

</mosaic_0001>

<llo_original>
// kernel: tpu_custom_call.1
$region0: #{tpu_custom_call.1}
  #allocation0 [shape = 'u32[]', space=smem, size = 0x4, offset = 0x4, fixed_abs, tag = 'smem constant byte address 0x4 - core index']
  #allocation1 [shape = 'u32[144,128]{1,0:T(1,128)}', space=vmem, size = 0x12000, scoped, tag = 'internal scratch']
  #allocation2 [shape = 'f32[1,1]{1,0:T(1,128)S(1)}', space=vmem, size = 0x200, scoped, tag = 'scoped memory for tpu_custom_call.1']
  %s0 = inlined_call_operand.hbm [shape: f32[2,25088], index: 0, kind: input, shape index: {}]
  %s1 = inlined_call_operand.hbm [shape: f32[1,25088], index: 1, kind: input, shape index: {}]
  %s2 = inlined_call_operand.<no memory space> [shape: f32[1,1], index: 2, kind: input, shape index: {}]
  %s3 = inlined_call_operand.vmem [shape: f32[2,1], index: 3, kind: output, shape index: {}]
  %s4 = sld [smem:[#allocation0]]
  $region37: #{tpu_custom_call.1} parent=0
    _
  %s6 = ssub.s32 1, %s4
  %s7 = scalar_select 0, %s6, %s4
  %v8 = vstv %s2
  %9 = vst [vmem:[#allocation2] sm:$0x1] %v8
  $region1: #{tpu_custom_call.1} parent=0
    #allocation3 [shape = 'u8[200704]{0}', space=vmem, size = 0x31000, scoped, tag = 'input window, operand 0, single buffered']
    #allocation4 [shape = 's32[1]{0}', space=sflag, size = 0x4, scoped, tag = 'scoped memory for tpu_custom_call.1']
    #allocation5 [shape = 'u8[100352]{0}', space=vmem, size = 0x18800, scoped, tag = 'input window, operand 1, single buffered']
    #allocation6 [shape = 's32[1]{0}', space=sflag, size = 0x4, scoped, tag = 'scoped memory for tpu_custom_call.1']
    %10 = vsyncpa [#allocation4], 0
    %11 = vsyncpa [#allocation6], 0
    // Predicated region
    $region2: #{tpu_custom_call.1} parent=1 // pred_check
      _
    $region3: #{tpu_custom_call.1} parent=1 // pred_check_branch
      %13 = sbr.rel (0) target = $region5
    $region4: #{tpu_custom_call.1} parent=1 // pred_region
      %s15 = ssub.s32 6272, 6272
      %16 = vsyncadd [#allocation4], %s15
      %s18 = sshll.u32 [#allocation3], 4
      %s19 = int_to_ptr.vmem [resolvable:$true] %s18
      %21 = dma.hbm_to_vmem [thread:$0]  %s0, 6272, %s19, [#allocation4]
    $region5: #{tpu_custom_call.1} parent=1 // pred_fallthru
      _
    // Predicated region
    $region6: #{tpu_custom_call.1} parent=1 // pred_check
      _
    $region7: #{tpu_custom_call.1} parent=1 // pred_check_branch
      %23 = sbr.rel (0) target = $region9
    $region8: #{tpu_custom_call.1} parent=1 // pred_region
      %s25 = ssub.s32 3136, 3136
      %26 = vsyncadd [#allocation6], %s25
      %s28 = sshll.u32 [#allocation5], 4
      %s29 = int_to_ptr.vmem [resolvable:$true] %s28
      %31 = dma.hbm_to_vmem [thread:$0]  %s1, 3136, %s29, [#allocation6]
    $region9: #{tpu_custom_call.1} parent=1 // pred_fallthru
      _
    // Predicated region
    $region10: #{tpu_custom_call.1} parent=1 // pred_check
      _
    $region11: #{tpu_custom_call.1} parent=1 // pred_check_branch
      %33 = sbr.rel (0) target = $region13
    $region12: #{tpu_custom_call.1} parent=1 // pred_region
      _
    $region13: #{tpu_custom_call.1} parent=1 // pred_fallthru
      _
    // Predicated region
    $region14: #{tpu_custom_call.1} parent=1 // pred_check
      _
    $region15: #{tpu_custom_call.1} parent=1 // pred_check_branch
      %35 = sbr.rel (0) target = $region17
    $region16: #{tpu_custom_call.1} parent=1 // pred_region
      %36 = dma.done [#allocation4], 6272
    $region17: #{tpu_custom_call.1} parent=1 // pred_fallthru
      _
    // Predicated region
    $region18: #{tpu_custom_call.1} parent=1 // pred_check
      _
    $region19: #{tpu_custom_call.1} parent=1 // pred_check_branch
      %38 = sbr.rel (0) target = $region21
    $region20: #{tpu_custom_call.1} parent=1 // pred_region
      %39 = dma.done [#allocation6], 3136
    $region21: #{tpu_custom_call.1} parent=1 // pred_fallthru
      _
    loop: start=0, step=1, limit=7
    $region22: #{tpu_custom_call.1} parent=1 // loop_pre_header
      _
    $region23: #{tpu_custom_call.1} parent=1 // loop_header
      %s41 = sphi 0, %s45
      %p42 = scmp.ge.s32.totalorder %s41, 7
      %v46 = vphi 0.0, %v319
      %v47 = vphi 0.0, %v320
      %v48 = vphi 0.0, %v321
      %v49 = vphi 0.0, %v322
      %v50 = vphi 0.0, %v323
      %v51 = vphi 0.0, %v324
      %v52 = vphi 0.0, %v325
    $region24: #{tpu_custom_call.1} parent=1 // loop_header_branch
      %44 = sbr.rel (%p42) target = $region28
    $region25: #{tpu_custom_call.1} parent=1 // loop_body
      %s53 = smul.u32 %s41, 3584
      %s54 = sshra.s32 %s53, 7
      %s55 = sand.u32 %s53, 127
      %s56 = smul.addr %s54, 2
      %s57 = scalar_lea.vmem [#allocation3], %s56
      %v58 = vld [vmem:[%s57] sm:$0xff]
      %v59 = vld [vmem:[%s57 + $0x8] sm:$0xff]
      %v60 = vld [vmem:[%s57 + $0x10] sm:$0xff]
      %v61 = vld [vmem:[%s57 + $0x18] sm:$0xff]
      %v62 = vld [vmem:[%s57 + $0x20] sm:$0xff]
      %v63 = vld [vmem:[%s57 + $0x28] sm:$0xff]
      %v64 = vld [vmem:[%s57 + $0x30] sm:$0xff]
      %s65 = scalar_lea.vmem [#allocation5], %s54
      %v66 = vld [vmem:[%s65] sm:$0xff]
      %v67 = vld [vmem:[%s65 + $0x8] sm:$0xff]
      %v68 = vld [vmem:[%s65 + $0x10] sm:$0xff]
      %v69 = vld [vmem:[%s65 + $0x18] sm:$0xf]
      %v74 = vlaneseq
      %v75 = vshrl.u32 %v74, 7
      %v76 = vsub.s32 0, %v75
      %v77 = vrot.slane %v66, %v76
      %v78 = vlaneseq
      %v79 = vshrl.u32 %v78, 7
      %v80 = vsub.s32 1, %v79
      %v81 = vrot.slane %v66, %v80
      %v82 = vlaneseq
      %v83 = vshrl.u32 %v82, 7
      %v84 = vsub.s32 2, %v83
      %v85 = vrot.slane %v66, %v84
      %v86 = vlaneseq
      %v87 = vshrl.u32 %v86, 7
      %v88 = vsub.s32 3, %v87
      %v89 = vrot.slane %v66, %v88
      %v90 = vlaneseq
      %v91 = vshrl.u32 %v90, 7
      %v92 = vsub.s32 4, %v91
      %v93 = vrot.slane %v66, %v92
      %v94 = vlaneseq
      %v95 = vshrl.u32 %v94, 7
      %v96 = vsub.s32 5, %v95
      %v97 = vrot.slane %v66, %v96
      %v98 = vlaneseq
      %v99 = vshrl.u32 %v98, 7
      %v100 = vsub.s32 6, %v99
      %v101 = vrot.slane %v66, %v100
      %v102 = vlaneseq
      %v103 = vshrl.u32 %v102, 7
      %v104 = vsub.s32 7, %v103
      %v105 = vrot.slane %v66, %v104
      %v106 = vlaneseq
      %v107 = vshrl.u32 %v106, 7
      %v108 = vsub.s32 0, %v107
      %v109 = vrot.slane %v67, %v108
      %v110 = vlaneseq
      %v111 = vshrl.u32 %v110, 7
      %v112 = vsub.s32 1, %v111
      %v113 = vrot.slane %v67, %v112
      %v114 = vlaneseq
      %v115 = vshrl.u32 %v114, 7
      %v116 = vsub.s32 2, %v115
      %v117 = vrot.slane %v67, %v116
      %v118 = vlaneseq
      %v119 = vshrl.u32 %v118, 7
      %v120 = vsub.s32 3, %v119
      %v121 = vrot.slane %v67, %v120
      %v122 = vlaneseq
      %v123 = vshrl.u32 %v122, 7
      %v124 = vsub.s32 4, %v123
      %v125 = vrot.slane %v67, %v124
      %v126 = vlaneseq
      %v127 = vshrl.u32 %v126, 7
      %v128 = vsub.s32 5, %v127
      %v129 = vrot.slane %v67, %v128
      %v130 = vlaneseq
      %v131 = vshrl.u32 %v130, 7
      %v132 = vsub.s32 6, %v131
      %v133 = vrot.slane %v67, %v132
      %v134 = vlaneseq
      %v135 = vshrl.u32 %v134, 7
      %v136 = vsub.s32 7, %v135
      %v137 = vrot.slane %v67, %v136
      %v138 = vlaneseq
      %v139 = vshrl.u32 %v138, 7
      %v140 = vsub.s32 0, %v139
      %v141 = vrot.slane %v68, %v140
      %v142 = vlaneseq
      %v143 = vshrl.u32 %v142, 7
      %v144 = vsub.s32 1, %v143
      %v145 = vrot.slane %v68, %v144
      %v146 = vlaneseq
      %v147 = vshrl.u32 %v146, 7
      %v148 = vsub.s32 2, %v147
      %v149 = vrot.slane %v68, %v148
      %v150 = vlaneseq
      %v151 = vshrl.u32 %v150, 7
      %v152 = vsub.s32 3, %v151
      %v153 = vrot.slane %v68, %v152
      %v154 = vlaneseq
      %v155 = vshrl.u32 %v154, 7
      %v156 = vsub.s32 4, %v155
      %v157 = vrot.slane %v68, %v156
      %v158 = vlaneseq
      %v159 = vshrl.u32 %v158, 7
      %v160 = vsub.s32 5, %v159
      %v161 = vrot.slane %v68, %v160
      %v162 = vlaneseq
      %v163 = vshrl.u32 %v162, 7
      %v164 = vsub.s32 6, %v163
      %v165 = vrot.slane %v68, %v164
      %v166 = vlaneseq
      %v167 = vshrl.u32 %v166, 7
      %v168 = vsub.s32 7, %v167
      %v169 = vrot.slane %v68, %v168
      %v170 = vlaneseq
      %v171 = vshrl.u32 %v170, 7
      %v172 = vsub.s32 0, %v171
      %v173 = vrot.slane %v69, %v172
      %v174 = vlaneseq
      %v175 = vshrl.u32 %v174, 7
      %v176 = vsub.s32 1, %v175
      %v177 = vrot.slane %v69, %v176
      %v178 = vlaneseq
      %v179 = vshrl.u32 %v178, 7
      %v180 = vsub.s32 2, %v179
      %v181 = vrot.slane %v69, %v180
      %v182 = vlaneseq
      %v183 = vshrl.u32 %v182, 7
      %v184 = vsub.s32 3, %v183
      %v185 = vrot.slane %v69, %v184
      %v186 = vcombine.low %v77, %v81
      %v187 = vcombine.low %v85, %v89
      %v189 = vunpack.c.l.s4 1983009808
      %v190 = vunpack.c.0.s8 %v189
      %v191 = vlaneseq
      %v192 = vshrl.u32 %v191, 7
      %v193 = vsub.s32 %v190, %v192
      %v194 = vrot.slane %v186, %v193
      %v196 = vunpack.c.l.s4 1983009808
      %v197 = vunpack.c.0.s8 %v196
      %v198 = vlaneseq
      %v199 = vshrl.u32 %v198, 7
      %v200 = vsub.s32 %v197, %v199
      %v201 = vrot.slane %v187, %v200
      %v202 = vcombine.low %v194, %v201
      %v203 = vcombine.low %v93, %v97
      %v204 = vcombine.low %v101, %v105
      %v206 = vunpack.c.l.s4 1983009808
      %v207 = vunpack.c.0.s8 %v206
      %v208 = vlaneseq
      %v209 = vshrl.u32 %v208, 7
      %v210 = vsub.s32 %v207, %v209
      %v211 = vrot.slane %v203, %v210
      %v213 = vunpack.c.l.s4 1983009808
      %v214 = vunpack.c.0.s8 %v213
      %v215 = vlaneseq
      %v216 = vshrl.u32 %v215, 7
      %v217 = vsub.s32 %v214, %v216
      %v218 = vrot.slane %v204, %v217
      %v219 = vcombine.low %v211, %v218
      %v220 = vcombine.low %v109, %v113
      %v221 = vcombine.low %v117, %v121
      %v223 = vunpack.c.l.s4 1983009808
      %v224 = vunpack.c.0.s8 %v223
      %v225 = vlaneseq
      %v226 = vshrl.u32 %v225, 7
      %v227 = vsub.s32 %v224, %v226
      %v228 = vrot.slane %v220, %v227
      %v230 = vunpack.c.l.s4 1983009808
      %v231 = vunpack.c.0.s8 %v230
      %v232 = vlaneseq
      %v233 = vshrl.u32 %v232, 7
      %v234 = vsub.s32 %v231, %v233
      %v235 = vrot.slane %v221, %v234
      %v236 = vcombine.low %v228, %v235
      %v237 = vcombine.low %v125, %v129
      %v238 = vcombine.low %v133, %v137
      %v240 = vunpack.c.l.s4 1983009808
      %v241 = vunpack.c.0.s8 %v240
      %v242 = vlaneseq
      %v243 = vshrl.u32 %v242, 7
      %v244 = vsub.s32 %v241, %v243
      %v245 = vrot.slane %v237, %v244
      %v247 = vunpack.c.l.s4 1983009808
      %v248 = vunpack.c.0.s8 %v247
      %v249 = vlaneseq
      %v250 = vshrl.u32 %v249, 7
      %v251 = vsub.s32 %v248, %v250
      %v252 = vrot.slane %v238, %v251
      %v253 = vcombine.low %v245, %v252
      %v254 = vcombine.low %v141, %v145
      %v255 = vcombine.low %v149, %v153
      %v257 = vunpack.c.l.s4 1983009808
      %v258 = vunpack.c.0.s8 %v257
      %v259 = vlaneseq
      %v260 = vshrl.u32 %v259, 7
      %v261 = vsub.s32 %v258, %v260
      %v262 = vrot.slane %v254, %v261
      %v264 = vunpack.c.l.s4 1983009808
      %v265 = vunpack.c.0.s8 %v264
      %v266 = vlaneseq
      %v267 = vshrl.u32 %v266, 7
      %v268 = vsub.s32 %v265, %v267
      %v269 = vrot.slane %v255, %v268
      %v270 = vcombine.low %v262, %v269
      %v271 = vcombine.low %v157, %v161
      %v272 = vcombine.low %v165, %v169
      %v274 = vunpack.c.l.s4 1983009808
      %v275 = vunpack.c.0.s8 %v274
      %v276 = vlaneseq
      %v277 = vshrl.u32 %v276, 7
      %v278 = vsub.s32 %v275, %v277
      %v279 = vrot.slane %v271, %v278
      %v281 = vunpack.c.l.s4 1983009808
      %v282 = vunpack.c.0.s8 %v281
      %v283 = vlaneseq
      %v284 = vshrl.u32 %v283, 7
      %v285 = vsub.s32 %v282, %v284
      %v286 = vrot.slane %v272, %v285
      %v287 = vcombine.low %v279, %v286
      %v288 = vcombine.low %v173, %v177
      %v289 = vcombine.low %v181, %v185
      %v291 = vunpack.c.l.s4 1983009808
      %v292 = vunpack.c.0.s8 %v291
      %v293 = vlaneseq
      %v294 = vshrl.u32 %v293, 7
      %v295 = vsub.s32 %v292, %v294
      %v296 = vrot.slane %v288, %v295
      %v298 = vunpack.c.l.s4 1983009808
      %v299 = vunpack.c.0.s8 %v298
      %v300 = vlaneseq
      %v301 = vshrl.u32 %v300, 7
      %v302 = vsub.s32 %v299, %v301
      %v303 = vrot.slane %v289, %v302
      %v304 = vcombine.low %v296, %v303
      %v312 = vmul.f32 %v58, %v202
      %v313 = vmul.f32 %v59, %v219
      %v314 = vmul.f32 %v60, %v236
      %v315 = vmul.f32 %v61, %v253
      %v316 = vmul.f32 %v62, %v270
      %v317 = vmul.f32 %v63, %v287
      %v318 = vmul.f32 %v64, %v304
      %v319 = vadd.f32 %v46, %v312
      %v320 = vadd.f32 %v47, %v313
      %v321 = vadd.f32 %v48, %v314
      %v322 = vadd.f32 %v49, %v315
      %v323 = vadd.f32 %v50, %v316
      %v324 = vadd.f32 %v51, %v317
      %v325 = vadd.f32 %v52, %v318
    $region26: #{tpu_custom_call.1} parent=1 // loop_footer
      %s45 = sadd.s32 1, %s41
    $region27: #{tpu_custom_call.1} parent=1 // loop_footer_branch
      %40 = sbr.rel target = $region23
    $region28: #{tpu_custom_call.1} parent=1 // loop_exit
      _
    %v333 = vcombine.high %v46, %v46
    %v335 = vunpack.c.l.s4 1983009808
    %v336 = vunpack.c.0.s8 %v335
    %v337 = vlaneseq
    %v338 = vshrl.u32 %v337, 7
    %v339 = vsub.s32 %v336, %v338
    %v340 = vrot.slane %v46, %v339
    %v342 = vunpack.c.l.s4 1983009808
    %v343 = vunpack.c.0.s8 %v342
    %v344 = vlaneseq
    %v345 = vshrl.u32 %v344, 7
    %v346 = vsub.s32 %v343, %v345
    %v347 = vrot.slane %v333, %v346
    %v348 = vcombine.high %v340, %v340
    %v349 = vcombine.high %v347, %v347
    %v350 = vcombine.high %v47, %v47
    %v352 = vunpack.c.l.s4 1983009808
    %v353 = vunpack.c.0.s8 %v352
    %v354 = vlaneseq
    %v355 = vshrl.u32 %v354, 7
    %v356 = vsub.s32 %v353, %v355
    %v357 = vrot.slane %v47, %v356
    %v359 = vunpack.c.l.s4 1983009808
    %v360 = vunpack.c.0.s8 %v359
    %v361 = vlaneseq
    %v362 = vshrl.u32 %v361, 7
    %v363 = vsub.s32 %v360, %v362
    %v364 = vrot.slane %v350, %v363
    %v365 = vcombine.high %v357, %v357
    %v366 = vcombine.high %v364, %v364
    %v367 = vcombine.high %v48, %v48
    %v369 = vunpack.c.l.s4 1983009808
    %v370 = vunpack.c.0.s8 %v369
    %v371 = vlaneseq
    %v372 = vshrl.u32 %v371, 7
    %v373 = vsub.s32 %v370, %v372
    %v374 = vrot.slane %v48, %v373
    %v376 = vunpack.c.l.s4 1983009808
    %v377 = vunpack.c.0.s8 %v376
    %v378 = vlaneseq
    %v379 = vshrl.u32 %v378, 7
    %v380 = vsub.s32 %v377, %v379
    %v381 = vrot.slane %v367, %v380
    %v382 = vcombine.high %v374, %v374
    %v383 = vcombine.high %v381, %v381
    %v384 = vcombine.high %v49, %v49
    %v386 = vunpack.c.l.s4 1983009808
    %v387 = vunpack.c.0.s8 %v386
    %v388 = vlaneseq
    %v389 = vshrl.u32 %v388, 7
    %v390 = vsub.s32 %v387, %v389
    %v391 = vrot.slane %v49, %v390
    %v393 = vunpack.c.l.s4 1983009808
    %v394 = vunpack.c.0.s8 %v393
    %v395 = vlaneseq
    %v396 = vshrl.u32 %v395, 7
    %v397 = vsub.s32 %v394, %v396
    %v398 = vrot.slane %v384, %v397
    %v399 = vcombine.high %v391, %v391
    %v400 = vcombine.high %v398, %v398
    %v401 = vcombine.high %v50, %v50
    %v403 = vunpack.c.l.s4 1983009808
    %v404 = vunpack.c.0.s8 %v403
    %v405 = vlaneseq
    %v406 = vshrl.u32 %v405, 7
    %v407 = vsub.s32 %v404, %v406
    %v408 = vrot.slane %v50, %v407
    %v410 = vunpack.c.l.s4 1983009808
    %v411 = vunpack.c.0.s8 %v410
    %v412 = vlaneseq
    %v413 = vshrl.u32 %v412, 7
    %v414 = vsub.s32 %v411, %v413
    %v415 = vrot.slane %v401, %v414
    %v416 = vcombine.high %v408, %v408
    %v417 = vcombine.high %v415, %v415
    %v418 = vcombine.high %v51, %v51
    %v420 = vunpack.c.l.s4 1983009808
    %v421 = vunpack.c.0.s8 %v420
    %v422 = vlaneseq
    %v423 = vshrl.u32 %v422, 7
    %v424 = vsub.s32 %v421, %v423
    %v425 = vrot.slane %v51, %v424
    %v427 = vunpack.c.l.s4 1983009808
    %v428 = vunpack.c.0.s8 %v427
    %v429 = vlaneseq
    %v430 = vshrl.u32 %v429, 7
    %v431 = vsub.s32 %v428, %v430
    %v432 = vrot.slane %v418, %v431
    %v433 = vcombine.high %v425, %v425
    %v434 = vcombine.high %v432, %v432
    %v435 = vcombine.high %v52, %v52
    %v437 = vunpack.c.l.s4 1983009808
    %v438 = vunpack.c.0.s8 %v437
    %v439 = vlaneseq
    %v440 = vshrl.u32 %v439, 7
    %v441 = vsub.s32 %v438, %v440
    %v442 = vrot.slane %v52, %v441
    %v444 = vunpack.c.l.s4 1983009808
    %v445 = vunpack.c.0.s8 %v444
    %v446 = vlaneseq
    %v447 = vshrl.u32 %v446, 7
    %v448 = vsub.s32 %v445, %v447
    %v449 = vrot.slane %v435, %v448
    %v450 = vcombine.high %v442, %v442
    %v451 = vcombine.high %v449, %v449
    %vm480 = vcmask 1041408
    %v481 = vsel %vm480, %v340, 0.0
    %v482 = vsel %vm480, %v348, 0.0
    %v483 = vadd.f32 %v481, %v482
    %v484 = vsel %vm480, %v347, 0.0
    %v485 = vadd.f32 %v483, %v484
    %v486 = vsel %vm480, %v349, 0.0
    %v487 = vadd.f32 %v485, %v486
    %v488 = vsel %vm480, %v357, 0.0
    %v489 = vadd.f32 %v487, %v488
    %v490 = vsel %vm480, %v365, 0.0
    %v491 = vadd.f32 %v489, %v490
    %v492 = vsel %vm480, %v364, 0.0
    %v493 = vadd.f32 %v491, %v492
    %v494 = vsel %vm480, %v366, 0.0
    %v495 = vadd.f32 %v493, %v494
    %v496 = vsel %vm480, %v374, 0.0
    %v497 = vadd.f32 %v495, %v496
    %v498 = vsel %vm480, %v382, 0.0
    %v499 = vadd.f32 %v497, %v498
    %v500 = vsel %vm480, %v381, 0.0
    %v501 = vadd.f32 %v499, %v500
    %v502 = vsel %vm480, %v383, 0.0
    %v503 = vadd.f32 %v501, %v502
    %v504 = vsel %vm480, %v391, 0.0
    %v505 = vadd.f32 %v503, %v504
    %v506 = vsel %vm480, %v399, 0.0
    %v507 = vadd.f32 %v505, %v506
    %v508 = vsel %vm480, %v398, 0.0
    %v509 = vadd.f32 %v507, %v508
    %v510 = vsel %vm480, %v400, 0.0
    %v511 = vadd.f32 %v509, %v510
    %v512 = vsel %vm480, %v408, 0.0
    %v513 = vadd.f32 %v511, %v512
    %v514 = vsel %vm480, %v416, 0.0
    %v515 = vadd.f32 %v513, %v514
    %v516 = vsel %vm480, %v415, 0.0
    %v517 = vadd.f32 %v515, %v516
    %v518 = vsel %vm480, %v417, 0.0
    %v519 = vadd.f32 %v517, %v518
    %v520 = vsel %vm480, %v425, 0.0
    %v521 = vadd.f32 %v519, %v520
    %v522 = vsel %vm480, %v433, 0.0
    %v523 = vadd.f32 %v521, %v522
    %v524 = vsel %vm480, %v432, 0.0
    %v525 = vadd.f32 %v523, %v524
    %v526 = vsel %vm480, %v434, 0.0
    %v527 = vadd.f32 %v525, %v526
    %v528 = vsel %vm480, %v442, 0.0
    %v529 = vadd.f32 %v527, %v528
    %v530 = vsel %vm480, %v450, 0.0
    %v531 = vadd.f32 %v529, %v530
    %v532 = vsel %vm480, %v449, 0.0
    %v533 = vadd.f32 %v531, %v532
    %v534 = vsel %vm480, %v451, 0.0
    %v535 = vadd.f32 %v533, %v534
    %536 = vadd.xlane.f32.xlu0 %v535
    %v537 = vpop.xlane.xlu0 %536
    %v538 = vld [vmem:[#allocation2] sm:$0x1]
    %v540 = vlaneseq
    %v541 = vshrl.u32 %v540, 7
    %v542 = vsub.s32 0, %v541
    %v543 = vrot.slane %v538, %v542
    %v545 = vadd.f32 %v537, %v543
    %v546 = vmul.f32 %v545, 0.0
    %v547 = vadd.f32 %v546, 64.0
    %vm548 = vcmask 1024
    %549 = vst.msk [vmem:[%s3] sm:$0x3] %vm548, %v547
    // Predicated region
    $region29: #{tpu_custom_call.1} parent=1 // pred_check
      _
    $region30: #{tpu_custom_call.1} parent=1 // pred_check_branch
      %551 = sbr.rel (0) target = $region32
    $region31: #{tpu_custom_call.1} parent=1 // pred_region
      _
    $region32: #{tpu_custom_call.1} parent=1 // pred_fallthru
      _
    // Predicated region
    $region33: #{tpu_custom_call.1} parent=1 // pred_check
      _
    $region34: #{tpu_custom_call.1} parent=1 // pred_check_branch
      %553 = sbr.rel (0) target = $region36
    $region35: #{tpu_custom_call.1} parent=1 // pred_region
      _
    $region36: #{tpu_custom_call.1} parent=1 // pred_fallthru
      _
    %554 = vsyncpa [#allocation4], 1
    %555 = vsyncpa [#allocation6], 1

</llo_original>
